<compile_context>
chip_gen: v5e
topology: v5e:2x2
jax: 0.10.0
libtpu: 0.0.40
codegen_flags: <defaults>
</compile_context>

<pallas_src>
import jax
import jax.numpy as jnp
from jax.experimental import pallas as pl
from jax.experimental.pallas import tpu as pltpu

BN_EPS = 1e-5


def _round_up(x, m):
    return ((x + m - 1) // m) * m


def _pad2d(x, rows, cols):
    return jnp.pad(x, ((0, rows - x.shape[0]), (0, cols - x.shape[1])))


# ---------------------------------------------------------------------------
# Kernel: one batch tile -> (TB, Hpad) activations.  All BN affine / mean
# scaling is pre-folded into (w*, c*), so the body is matmul + bias + ReLU only.
# ---------------------------------------------------------------------------
def mean_encoder_kernel(ids_ref, seg_ref, emb_ref,
                        w1_ref, c1_ref, w2_ref, c2_ref, w3_ref, c3_ref,
                        out_ref):
    n_rows = ids_ref.shape[0]            # TB * S  (flattened tokens of this tile)
    vpad = emb_ref.shape[0]

    # 2-D one-hot: sublanes = flattened tokens, lanes = padded vocab.
    vocab_iota = jax.lax.broadcasted_iota(jnp.int32, (n_rows, vpad), 1)
    onehot = (ids_ref[...] == vocab_iota).astype(jnp.float32)        # (TB*S, Vpad)

    # Sum over the sequence on the MXU via the segment matrix, then gather the
    # (summed) embeddings.  The 1/S mean factor is folded into w1.
    counts = jnp.dot(seg_ref[...], onehot,
                     preferred_element_type=jnp.float32)             # (TB, Vpad)
    h = jnp.dot(counts, emb_ref[...],
                preferred_element_type=jnp.float32)                  # (TB, Epad)

    # 3x [BatchNorm(folded) -> Linear -> ReLU -> Dropout(identity, eval)]
    h = jnp.maximum(jnp.dot(h, w1_ref[...], preferred_element_type=jnp.float32)
                    + c1_ref[...], 0.0)
    h = jnp.maximum(jnp.dot(h, w2_ref[...], preferred_element_type=jnp.float32)
                    + c2_ref[...], 0.0)
    h = jnp.maximum(jnp.dot(h, w3_ref[...], preferred_element_type=jnp.float32)
                    + c3_ref[...], 0.0)
    out_ref[...] = h.astype(out_ref.dtype)


# ---------------------------------------------------------------------------
# Host-side folding: eval BatchNorm1d (+ optional input pre-scale) into Linear.
#   relu(((x*pre - m)*s + b) @ W + c) == relu(x @ ((s*pre)[:,None]*W) + ((b-m*s)@W + c))
# ---------------------------------------------------------------------------
def _fold_bn_into_linear(g, b, m, v, w, c, pre_scale=1.0):
    s = g * jax.lax.rsqrt(v + BN_EPS)                 # (1, Fin)
    w_f = (s * pre_scale).reshape(-1, 1) * w          # (Fin, Fout)
    c_f = (b - m * s) @ w + c                         # (1, Fout)
    return w_f, c_f


@jax.jit
def mean_encoder_forward(ids, params):
    """ids: (B, S) int32 token indices in [0, vocab_size]. Returns (B, hidden)."""
    B, S = ids.shape
    Vp1, E = params["emb"].shape
    H = params["w1"].shape[1]

    # ---- fold eval-mode BN + 1/S mean into the linear layers (host side) ----
    w1f, c1f = _fold_bn_into_linear(params["g1"], params["b1"], params["m1"],
                                    params["v1"], params["w1"], params["c1"],
                                    pre_scale=1.0 / S)
    w2f, c2f = _fold_bn_into_linear(params["g2"], params["b2"], params["m2"],
                                    params["v2"], params["w2"], params["c2"])
    w3f, c3f = _fold_bn_into_linear(params["g3"], params["b3"], params["m3"],
                                    params["v3"], params["w3"], params["c3"])

    # ---- pad feature / vocab dims to 128 lanes, batch to the sublane tile ----
    Epad = _round_up(E, 128)
    Hpad = _round_up(H, 128)
    Vpad = _round_up(Vp1, 128)
    TB = 128 if B >= 128 else _round_up(B, 8)     # batch tile (sublane-aligned)
    Bpad = _round_up(B, TB)

    emb_p = _pad2d(params["emb"], Vpad, Epad)
    w1p, c1p = _pad2d(w1f, Epad, Hpad), _pad2d(c1f, 1, Hpad)
    w2p, c2p = _pad2d(w2f, Hpad, Hpad), _pad2d(c2f, 1, Hpad)
    w3p, c3p = _pad2d(w3f, Hpad, Hpad), _pad2d(c3f, 1, Hpad)

    # Padded batch rows get token 0 (zero padding row of the embedding).
    ids_p = jnp.pad(ids.astype(jnp.int32), ((0, Bpad - B), (0, 0)))
    ids_flat = ids_p.reshape(Bpad * S, 1)

    # Segment matrix: seg[b, j] = 1 iff flattened token j belongs to row b of a tile.
    seg = (jnp.arange(TB * S)[None, :] // S ==
           jnp.arange(TB)[:, None]).astype(jnp.float32)              # (TB, TB*S)

    const = lambda i: (0, 0)
    out_p = pl.pallas_call(
        mean_encoder_kernel,
        out_shape=jax.ShapeDtypeStruct((Bpad, Hpad), jnp.float32),
        grid=(Bpad // TB,),
        in_specs=[
            pl.BlockSpec((TB * S, 1), lambda i: (i, 0)),   # ids for this batch tile
            pl.BlockSpec((TB, TB * S), const),             # segment matrix (resident)
            pl.BlockSpec((Vpad, Epad), const),             # embedding table (resident)
            pl.BlockSpec((Epad, Hpad), const),             # folded W1
            pl.BlockSpec((1, Hpad), const),                # folded c1
            pl.BlockSpec((Hpad, Hpad), const),             # folded W2
            pl.BlockSpec((1, Hpad), const),                # folded c2
            pl.BlockSpec((Hpad, Hpad), const),             # folded W3
            pl.BlockSpec((1, Hpad), const),                # folded c3
        ],
        out_specs=pl.BlockSpec((TB, Hpad), lambda i: (i, 0)),
        compiler_params=pltpu.CompilerParams(
            dimension_semantics=("parallel",),             # megacore-shard the batch
            vmem_limit_bytes=48 * 1024 * 1024,             # explicit, < v7x 64 MiB
        ),
    )(ids_flat, seg, emb_p, w1p, c1p, w2p, c2p, w3p, c3p)

    return out_p[:B, :H]


# ---------------------------------------------------------------------------
# Parameter construction (matches MeanEncoder.__init__ shapes) and pure-JAX
# reference of the PyTorch eval-mode forward.
# ---------------------------------------------------------------------------
def init_params(key, vocab_size, embed_dim, hidden_dim):
    keys = jax.random.split(key, 8)

    # nn.Embedding(vocab_size + 1, embed_dim, padding_idx=0); normal_(std=0.01)
    emb = 0.01 * jax.random.normal(keys[0], (vocab_size + 1, embed_dim), jnp.float32)
    emb = emb.at[0].set(0.0)  # padding row

    def linear(k, fan_in, fan_out):
        # stored pre-transposed: (in, out); bias as (1, out)
        w = 0.05 * jax.random.normal(k, (fan_in, fan_out), jnp.float32)
        c = 0.01 * jnp.ones((1, fan_out), jnp.float32)
        return w, c

    w1, c1 = linear(keys[1], embed_dim, hidden_dim)
    w2, c2 = linear(keys[2], hidden_dim, hidden_dim)
    w3, c3 = linear(keys[3], hidden_dim, hidden_dim)

    def bn(f):
        # PyTorch BatchNorm1d defaults: gamma=1, beta=0, running_mean=0, running_var=1
        return (jnp.ones((1, f), jnp.float32), jnp.zeros((1, f), jnp.float32),
                jnp.zeros((1, f), jnp.float32), jnp.ones((1, f), jnp.float32))

    g1, b1, m1, v1 = bn(embed_dim)
    g2, b2, m2, v2 = bn(hidden_dim)
    g3, b3, m3, v3 = bn(hidden_dim)

    return dict(emb=emb,
                g1=g1, b1=b1, m1=m1, v1=v1, w1=w1, c1=c1,
                g2=g2, b2=b2, m2=m2, v2=v2, w2=w2, c2=c2,
                g3=g3, b3=b3, m3=m3, v3=v3, w3=w3, c3=c3)


def reference_forward(ids, p):
    """Pure-JAX reference matching the PyTorch eval-mode forward."""
    h = jnp.take(p["emb"], ids, axis=0)           # (B, S, E)
    h = jnp.mean(h, axis=1)                       # (B, E)

    def block(x, g, b, m, v, w, c):
        xn = (x - m) * (g * jax.lax.rsqrt(v + BN_EPS)) + b
        return jnp.maximum(xn @ w + c, 0.0)

    h = block(h, p["g1"], p["b1"], p["m1"], p["v1"], p["w1"], p["c1"])
    h = block(h, p["g2"], p["b2"], p["m2"], p["v2"], p["w2"], p["c2"])
    h = block(h, p["g3"], p["b3"], p["m3"], p["v3"], p["w3"], p["c3"])
    return h


if __name__ == "__main__":
    vocab_size, embed_dim, hidden_dim = 50, 32, 200
    B, S = 4, 8

    key = jax.random.PRNGKey(0)
    k_ids, k_params = jax.random.split(key)
    params = init_params(k_params, vocab_size, embed_dim, hidden_dim)
    ids = jax.random.randint(k_ids, (B, S), 0, vocab_size + 1, dtype=jnp.int32)

    out = mean_encoder_forward(ids, params)
    out = jax.block_until_ready(out)

    ref = reference_forward(ids, params)
    assert out.shape == (B, hidden_dim) and out.dtype == jnp.float32
    assert jnp.allclose(out, ref, atol=1e-4, rtol=1e-4), "mismatch vs reference"
    print("KERNEL_OK")
</pallas_src>

<mosaic_0001>
module attributes {stable_mosaic.version = 11 : i64} {
  func.func @mean_encoder_kernel(%arg0: i32, %arg1: memref<64x1xi32, #tpu.memory_space<vmem>>, %arg2: memref<8x64xf32, #tpu.memory_space<vmem>>, %arg3: memref<128x128xf32, #tpu.memory_space<vmem>>, %arg4: memref<128x256xf32, #tpu.memory_space<vmem>>, %arg5: memref<1x256xf32, #tpu.memory_space<vmem>>, %arg6: memref<256x256xf32, #tpu.memory_space<vmem>>, %arg7: memref<1x256xf32, #tpu.memory_space<vmem>>, %arg8: memref<256x256xf32, #tpu.memory_space<vmem>>, %arg9: memref<1x256xf32, #tpu.memory_space<vmem>>, %arg10: memref<8x256xf32, #tpu.memory_space<vmem>>) attributes {dimension_semantics = [#tpu.dimension_semantics<parallel>], iteration_bounds = array<i64: 1>, scalar_prefetch = 0 : i64, scratch_operands = 0 : i64, tpu.core_type = #tpu.core_type<tc>, window_params = [{transform_indices = @transform_0, window_bounds = array<i64: 64, 1>}, {pipeline_mode = #tpu.pipeline_mode<synchronous>, transform_indices = @transform_1, window_bounds = array<i64: 8, 64>}, {pipeline_mode = #tpu.pipeline_mode<synchronous>, transform_indices = @transform_2, window_bounds = array<i64: 128, 128>}, {pipeline_mode = #tpu.pipeline_mode<synchronous>, transform_indices = @transform_3, window_bounds = array<i64: 128, 256>}, {pipeline_mode = #tpu.pipeline_mode<synchronous>, transform_indices = @transform_4, window_bounds = array<i64: 1, 256>}, {pipeline_mode = #tpu.pipeline_mode<synchronous>, transform_indices = @transform_5, window_bounds = array<i64: 256, 256>}, {pipeline_mode = #tpu.pipeline_mode<synchronous>, transform_indices = @transform_6, window_bounds = array<i64: 1, 256>}, {pipeline_mode = #tpu.pipeline_mode<synchronous>, transform_indices = @transform_7, window_bounds = array<i64: 256, 256>}, {pipeline_mode = #tpu.pipeline_mode<synchronous>, transform_indices = @transform_8, window_bounds = array<i64: 1, 256>}, {transform_indices = @transform_9, window_bounds = array<i64: 8, 256>}]} {
    %0 = tpu.iota {dimensions = array<i32: 1>} : vector<64x128xi32>
    %c0 = arith.constant 0 : index
    %c0_0 = arith.constant 0 : index
    %1 = vector.load %arg1[%c0, %c0_0] : memref<64x1xi32, #tpu.memory_space<vmem>>, vector<64x1xi32>
    %2 = vector.broadcast %1 : vector<64x1xi32> to vector<64x128xi32>
    %3 = arith.cmpi eq, %2, %0 : vector<64x128xi32>
    %4 = arith.extui %3 : vector<64x128xi1> to vector<64x128xi32>
    %5 = arith.sitofp %4 : vector<64x128xi32> to vector<64x128xf32>
    %c0_1 = arith.constant 0 : index
    %c0_2 = arith.constant 0 : index
    %6 = vector.load %arg2[%c0_1, %c0_2] : memref<8x64xf32, #tpu.memory_space<vmem>>, vector<8x64xf32>
    %cst = arith.constant dense<0.000000e+00> : vector<8x128xf32>
    %7 = tpu.matmul %6, %5, %cst {dimension_numbers = #tpu.dot_dimension_numbers<[1], [0], [0], [1], [0, 0, 1, 1], [], []>} : vector<8x64xf32>, vector<64x128xf32>, vector<8x128xf32> -> vector<8x128xf32>
    %c0_3 = arith.constant 0 : index
    %c0_4 = arith.constant 0 : index
    %8 = vector.load %arg3[%c0_3, %c0_4] : memref<128x128xf32, #tpu.memory_space<vmem>>, vector<128x128xf32>
    %cst_5 = arith.constant dense<0.000000e+00> : vector<8x128xf32>
    %9 = tpu.matmul %7, %8, %cst_5 {dimension_numbers = #tpu.dot_dimension_numbers<[1], [0], [0], [1], [0, 0, 1, 1], [], []>} : vector<8x128xf32>, vector<128x128xf32>, vector<8x128xf32> -> vector<8x128xf32>
    %c0_6 = arith.constant 0 : index
    %c0_7 = arith.constant 0 : index
    %10 = vector.load %arg4[%c0_6, %c0_7] : memref<128x256xf32, #tpu.memory_space<vmem>>, vector<128x256xf32>
    %cst_8 = arith.constant dense<0.000000e+00> : vector<8x256xf32>
    %11 = tpu.matmul %9, %10, %cst_8 {dimension_numbers = #tpu.dot_dimension_numbers<[1], [0], [0], [1], [0, 0, 1, 1], [], []>} : vector<8x128xf32>, vector<128x256xf32>, vector<8x256xf32> -> vector<8x256xf32>
    %c0_9 = arith.constant 0 : index
    %c0_10 = arith.constant 0 : index
    %12 = vector.load %arg5[%c0_9, %c0_10] : memref<1x256xf32, #tpu.memory_space<vmem>>, vector<1x256xf32>
    %13 = vector.broadcast %12 : vector<1x256xf32> to vector<8x256xf32>
    %14 = arith.addf %11, %13 : vector<8x256xf32>
    %cst_11 = arith.constant 0.000000e+00 : f32
    %15 = vector.broadcast %cst_11 : f32 to vector<8x256xf32>
    %16 = arith.maximumf %14, %15 : vector<8x256xf32>
    %c0_12 = arith.constant 0 : index
    %c0_13 = arith.constant 0 : index
    %17 = vector.load %arg6[%c0_12, %c0_13] : memref<256x256xf32, #tpu.memory_space<vmem>>, vector<256x256xf32>
    %cst_14 = arith.constant dense<0.000000e+00> : vector<8x256xf32>
    %18 = tpu.matmul %16, %17, %cst_14 {dimension_numbers = #tpu.dot_dimension_numbers<[1], [0], [0], [1], [0, 0, 1, 1], [], []>} : vector<8x256xf32>, vector<256x256xf32>, vector<8x256xf32> -> vector<8x256xf32>
    %c0_15 = arith.constant 0 : index
    %c0_16 = arith.constant 0 : index
    %19 = vector.load %arg7[%c0_15, %c0_16] : memref<1x256xf32, #tpu.memory_space<vmem>>, vector<1x256xf32>
    %20 = vector.broadcast %19 : vector<1x256xf32> to vector<8x256xf32>
    %21 = arith.addf %18, %20 : vector<8x256xf32>
    %cst_17 = arith.constant 0.000000e+00 : f32
    %22 = vector.broadcast %cst_17 : f32 to vector<8x256xf32>
    %23 = arith.maximumf %21, %22 : vector<8x256xf32>
    %c0_18 = arith.constant 0 : index
    %c0_19 = arith.constant 0 : index
    %24 = vector.load %arg8[%c0_18, %c0_19] : memref<256x256xf32, #tpu.memory_space<vmem>>, vector<256x256xf32>
    %cst_20 = arith.constant dense<0.000000e+00> : vector<8x256xf32>
    %25 = tpu.matmul %23, %24, %cst_20 {dimension_numbers = #tpu.dot_dimension_numbers<[1], [0], [0], [1], [0, 0, 1, 1], [], []>} : vector<8x256xf32>, vector<256x256xf32>, vector<8x256xf32> -> vector<8x256xf32>
    %c0_21 = arith.constant 0 : index
    %c0_22 = arith.constant 0 : index
    %26 = vector.load %arg9[%c0_21, %c0_22] : memref<1x256xf32, #tpu.memory_space<vmem>>, vector<1x256xf32>
    %27 = vector.broadcast %26 : vector<1x256xf32> to vector<8x256xf32>
    %28 = arith.addf %25, %27 : vector<8x256xf32>
    %cst_23 = arith.constant 0.000000e+00 : f32
    %29 = vector.broadcast %cst_23 : f32 to vector<8x256xf32>
    %30 = arith.maximumf %28, %29 : vector<8x256xf32>
    %c0_24 = arith.constant 0 : index
    %c0_25 = arith.constant 0 : index
    %31 = vector.load %arg10[%c0_24, %c0_25] : memref<8x256xf32, #tpu.memory_space<vmem>>, vector<8x256xf32>
    tpu.vector_store %arg10[%c0_24, %c0_25], %30 {strides = array<i32>} : memref<8x256xf32, #tpu.memory_space<vmem>>, vector<8x256xf32>,
    return
  }
  func.func @transform_0(%arg0: i32) -> (i32, i32) {
    %c0_i32 = arith.constant 0 : i32
    %c0_i32_0 = arith.constant 0 : i32
    return %arg0, %c0_i32 : i32, i32
  }
  func.func @transform_1(%arg0: i32) -> (i32, i32) {
    %c0_i32 = arith.constant 0 : i32
    %c0_i32_0 = arith.constant 0 : i32
    %c0_i32_1 = arith.constant 0 : i32
    return %c0_i32, %c0_i32_0 : i32, i32
  }
  func.func @transform_2(%arg0: i32) -> (i32, i32) {
    %c0_i32 = arith.constant 0 : i32
    %c0_i32_0 = arith.constant 0 : i32
    %c0_i32_1 = arith.constant 0 : i32
    return %c0_i32, %c0_i32_0 : i32, i32
  }
  func.func @transform_3(%arg0: i32) -> (i32, i32) {
    %c0_i32 = arith.constant 0 : i32
    %c0_i32_0 = arith.constant 0 : i32
    %c0_i32_1 = arith.constant 0 : i32
    return %c0_i32, %c0_i32_0 : i32, i32
  }
  func.func @transform_4(%arg0: i32) -> (i32, i32) {
    %c0_i32 = arith.constant 0 : i32
    %c0_i32_0 = arith.constant 0 : i32
    %c0_i32_1 = arith.constant 0 : i32
    return %c0_i32, %c0_i32_0 : i32, i32
  }
  func.func @transform_5(%arg0: i32) -> (i32, i32) {
    %c0_i32 = arith.constant 0 : i32
    %c0_i32_0 = arith.constant 0 : i32
    %c0_i32_1 = arith.constant 0 : i32
    return %c0_i32, %c0_i32_0 : i32, i32
  }
  func.func @transform_6(%arg0: i32) -> (i32, i32) {
    %c0_i32 = arith.constant 0 : i32
    %c0_i32_0 = arith.constant 0 : i32
    %c0_i32_1 = arith.constant 0 : i32
    return %c0_i32, %c0_i32_0 : i32, i32
  }
  func.func @transform_7(%arg0: i32) -> (i32, i32) {
    %c0_i32 = arith.constant 0 : i32
    %c0_i32_0 = arith.constant 0 : i32
    %c0_i32_1 = arith.constant 0 : i32
    return %c0_i32, %c0_i32_0 : i32, i32
  }
  func.func @transform_8(%arg0: i32) -> (i32, i32) {
    %c0_i32 = arith.constant 0 : i32
    %c0_i32_0 = arith.constant 0 : i32
    %c0_i32_1 = arith.constant 0 : i32
    return %c0_i32, %c0_i32_0 : i32, i32
  }
  func.func @transform_9(%arg0: i32) -> (i32, i32) {
    %c0_i32 = arith.constant 0 : i32
    %c0_i32_0 = arith.constant 0 : i32
    return %arg0, %c0_i32 : i32, i32
  }
}

</mosaic_0001>

<llo_original>
// kernel: mean_encoder_forward.1
$region0: #{mean_encoder_forward.1}
  #allocation0 [shape = 'u32[]', space=smem, size = 0x4, offset = 0x4, fixed_abs, tag = 'smem constant byte address 0x4 - core index']
  #allocation1 [shape = 'u32[72,128]{1,0:T(1,128)}', space=vmem, size = 0x9000, scoped, tag = 'internal scratch']
  %s0 = inlined_call_operand.vmem [shape: s32[64,1], index: 0, kind: input, shape index: {}]
  %s1 = inlined_call_operand.vmem [shape: f32[8,64], index: 1, kind: input, shape index: {}]
  %s2 = inlined_call_operand.vmem [shape: f32[128,128], index: 2, kind: input, shape index: {}]
  %s3 = inlined_call_operand.vmem [shape: f32[128,256], index: 3, kind: input, shape index: {}]
  %s4 = inlined_call_operand.vmem [shape: f32[1,256], index: 4, kind: input, shape index: {}]
  %s5 = inlined_call_operand.vmem [shape: f32[256,256], index: 5, kind: input, shape index: {}]
  %s6 = inlined_call_operand.vmem [shape: f32[1,256], index: 6, kind: input, shape index: {}]
  %s7 = inlined_call_operand.vmem [shape: f32[256,256], index: 7, kind: input, shape index: {}]
  %s8 = inlined_call_operand.vmem [shape: f32[1,256], index: 8, kind: input, shape index: {}]
  %s9 = inlined_call_operand.vmem [shape: f32[8,256], index: 9, kind: output, shape index: {}]
  %s10 = sld [smem:[#allocation0]]
  $region46: #{mean_encoder_forward.1} parent=0
    _
  %s12 = ssub.s32 1, %s10
  %s13 = scalar_select 0, %s12, %s10
  // Predicated region
  $region2: #{mean_encoder_forward.1} parent=0 // pred_check
    _
  $region3: #{mean_encoder_forward.1} parent=0 // pred_check_branch
    %15 = sbr.rel (0) target = $region5
  $region4: #{mean_encoder_forward.1} parent=0 // pred_region
    _
  $region5: #{mean_encoder_forward.1} parent=0 // pred_fallthru
    _
  // Predicated region
  $region6: #{mean_encoder_forward.1} parent=0 // pred_check
    _
  $region7: #{mean_encoder_forward.1} parent=0 // pred_check_branch
    %17 = sbr.rel (0) target = $region9
  $region8: #{mean_encoder_forward.1} parent=0 // pred_region
    _
  $region9: #{mean_encoder_forward.1} parent=0 // pred_fallthru
    _
  // Predicated region
  $region10: #{mean_encoder_forward.1} parent=0 // pred_check
    _
  $region11: #{mean_encoder_forward.1} parent=0 // pred_check_branch
    %19 = sbr.rel (0) target = $region13
  $region12: #{mean_encoder_forward.1} parent=0 // pred_region
    _
  $region13: #{mean_encoder_forward.1} parent=0 // pred_fallthru
    _
  // Predicated region
  $region14: #{mean_encoder_forward.1} parent=0 // pred_check
    _
  $region15: #{mean_encoder_forward.1} parent=0 // pred_check_branch
    %21 = sbr.rel (0) target = $region17
  $region16: #{mean_encoder_forward.1} parent=0 // pred_region
    _
  $region17: #{mean_encoder_forward.1} parent=0 // pred_fallthru
    _
  // Predicated region
  $region18: #{mean_encoder_forward.1} parent=0 // pred_check
    _
  $region19: #{mean_encoder_forward.1} parent=0 // pred_check_branch
    %23 = sbr.rel (0) target = $region21
  $region20: #{mean_encoder_forward.1} parent=0 // pred_region
    _
  $region21: #{mean_encoder_forward.1} parent=0 // pred_fallthru
    _
  // Predicated region
  $region22: #{mean_encoder_forward.1} parent=0 // pred_check
    _
  $region23: #{mean_encoder_forward.1} parent=0 // pred_check_branch
    %25 = sbr.rel (0) target = $region25
  $region24: #{mean_encoder_forward.1} parent=0 // pred_region
    _
  $region25: #{mean_encoder_forward.1} parent=0 // pred_fallthru
    _
  // Predicated region
  $region26: #{mean_encoder_forward.1} parent=0 // pred_check
    _
  $region27: #{mean_encoder_forward.1} parent=0 // pred_check_branch
    %27 = sbr.rel (0) target = $region29
  $region28: #{mean_encoder_forward.1} parent=0 // pred_region
    _
  $region29: #{mean_encoder_forward.1} parent=0 // pred_fallthru
    _
  // Predicated region
  $region30: #{mean_encoder_forward.1} parent=0 // pred_check
    _
  $region31: #{mean_encoder_forward.1} parent=0 // pred_check_branch
    %29 = sbr.rel (0) target = $region33
  $region32: #{mean_encoder_forward.1} parent=0 // pred_region
    _
  $region33: #{mean_encoder_forward.1} parent=0 // pred_fallthru
    _
  // Predicated region
  $region34: #{mean_encoder_forward.1} parent=0 // pred_check
    _
  $region35: #{mean_encoder_forward.1} parent=0 // pred_check_branch
    %31 = sbr.rel (0) target = $region37
  $region36: #{mean_encoder_forward.1} parent=0 // pred_region
    _
  $region37: #{mean_encoder_forward.1} parent=0 // pred_fallthru
    _
  %v32 = vlaneseq
  %v33 = vand.u32 %v32, 127
  %v34 = vld [vmem:[%s0] sm:$0xff]
  %v35 = vld [vmem:[%s0 + $0x8] sm:$0xff]
  %v36 = vld [vmem:[%s0 + $0x10] sm:$0xff]
  %v37 = vld [vmem:[%s0 + $0x18] sm:$0xff]
  %v38 = vld [vmem:[%s0 + $0x20] sm:$0xff]
  %v39 = vld [vmem:[%s0 + $0x28] sm:$0xff]
  %v40 = vld [vmem:[%s0 + $0x30] sm:$0xff]
  %v41 = vld [vmem:[%s0 + $0x38] sm:$0xff]
  %42 = vset.pattern.permute.xlu0 0
  %43 = vperm.xlu0 %42, %v34
  %v44 = vpop.permute.xlu0 %43
  %45 = vset.pattern.permute.xlu0 0
  %46 = vperm.xlu0 %45, %v35
  %v47 = vpop.permute.xlu0 %46
  %48 = vset.pattern.permute.xlu0 0
  %49 = vperm.xlu0 %48, %v36
  %v50 = vpop.permute.xlu0 %49
  %51 = vset.pattern.permute.xlu0 0
  %52 = vperm.xlu0 %51, %v37
  %v53 = vpop.permute.xlu0 %52
  %54 = vset.pattern.permute.xlu0 0
  %55 = vperm.xlu0 %54, %v38
  %v56 = vpop.permute.xlu0 %55
  %57 = vset.pattern.permute.xlu0 0
  %58 = vperm.xlu0 %57, %v39
  %v59 = vpop.permute.xlu0 %58
  %60 = vset.pattern.permute.xlu0 0
  %61 = vperm.xlu0 %60, %v40
  %v62 = vpop.permute.xlu0 %61
  %63 = vset.pattern.permute.xlu0 0
  %64 = vperm.xlu0 %63, %v41
  %v65 = vpop.permute.xlu0 %64
  %vm66 = vcmp.eq.s32.totalorder %v44, %v33
  %vm67 = vcmp.eq.s32.totalorder %v47, %v33
  %vm68 = vcmp.eq.s32.totalorder %v50, %v33
  %vm69 = vcmp.eq.s32.totalorder %v53, %v33
  %vm70 = vcmp.eq.s32.totalorder %v56, %v33
  %vm71 = vcmp.eq.s32.totalorder %v59, %v33
  %vm72 = vcmp.eq.s32.totalorder %v62, %v33
  %vm73 = vcmp.eq.s32.totalorder %v65, %v33
  %v74 = vsel %vm66, 1, 0
  %v75 = vsel %vm67, 1, 0
  %v76 = vsel %vm68, 1, 0
  %v77 = vsel %vm69, 1, 0
  %v78 = vsel %vm70, 1, 0
  %v79 = vsel %vm71, 1, 0
  %v80 = vsel %vm72, 1, 0
  %v81 = vsel %vm73, 1, 0
  %v82 = vcvt.s32.f32 %v74
  %v83 = vcvt.s32.f32 %v75
  %v84 = vcvt.s32.f32 %v76
  %v85 = vcvt.s32.f32 %v77
  %v86 = vcvt.s32.f32 %v78
  %v87 = vcvt.s32.f32 %v79
  %v88 = vcvt.s32.f32 %v80
  %v89 = vcvt.s32.f32 %v81
  %v90 = vld [vmem:[%s1] sm:$0xff]
  %vm91 = vcmask 523264
  %v93 = vsel %vm91, %v90, 0
  %95 = vmatpush.msra.mxu0 0.0
  %96 = vmatpush.msra.mxu0 0.0
  %97 = vmatpush.msra.mxu0 0.0
  %98 = vmatpush.msra.mxu0 0.0
  %99 = vmatpush.msra.mxu0 0.0
  %100 = vmatpush.msra.mxu0 0.0
  %101 = vmatpush.msra.mxu0 0.0
  %102 = vmatpush.msra.mxu0 0.0
  %103 = vmatpush.msra.mxu0 %v89
  %104 = vmatpush.msra.mxu0 %v88
  %105 = vmatpush.msra.mxu0 %v87
  %106 = vmatpush.msra.mxu0 %v86
  %107 = vmatpush.msra.mxu0 %v85
  %108 = vmatpush.msra.mxu0 %v84
  %109 = vmatpush.msra.mxu0 %v83
  %110 = vmatpush.msra.mxu0 %v82
  %111 = vmatmul.f32.gmra.mxu0 %v93
  %v112 = vpop.f32.mrf.mxu0
  %v113 = vadd.f32 0.0, %v112
  %114 = vdwg.mxu0
  %v115 = vld [vmem:[%s2] sm:$0xff]
  %v116 = vld [vmem:[%s2 + $0x8] sm:$0xff]
  %v117 = vld [vmem:[%s2 + $0x10] sm:$0xff]
  %v118 = vld [vmem:[%s2 + $0x18] sm:$0xff]
  %v119 = vld [vmem:[%s2 + $0x20] sm:$0xff]
  %v120 = vld [vmem:[%s2 + $0x28] sm:$0xff]
  %v121 = vld [vmem:[%s2 + $0x30] sm:$0xff]
  %v122 = vld [vmem:[%s2 + $0x38] sm:$0xff]
  %v123 = vld [vmem:[%s2 + $0x40] sm:$0xff]
  %v124 = vld [vmem:[%s2 + $0x48] sm:$0xff]
  %v125 = vld [vmem:[%s2 + $0x50] sm:$0xff]
  %v126 = vld [vmem:[%s2 + $0x58] sm:$0xff]
  %v127 = vld [vmem:[%s2 + $0x60] sm:$0xff]
  %v128 = vld [vmem:[%s2 + $0x68] sm:$0xff]
  %v129 = vld [vmem:[%s2 + $0x70] sm:$0xff]
  %v130 = vld [vmem:[%s2 + $0x78] sm:$0xff]
  %131 = vmatpush.msra.mxu0 %v130
  %132 = vmatpush.msra.mxu0 %v129
  %133 = vmatpush.msra.mxu0 %v128
  %134 = vmatpush.msra.mxu0 %v127
  %135 = vmatpush.msra.mxu0 %v126
  %136 = vmatpush.msra.mxu0 %v125
  %137 = vmatpush.msra.mxu0 %v124
  %138 = vmatpush.msra.mxu0 %v123
  %139 = vmatpush.msra.mxu0 %v122
  %140 = vmatpush.msra.mxu0 %v121
  %141 = vmatpush.msra.mxu0 %v120
  %142 = vmatpush.msra.mxu0 %v119
  %143 = vmatpush.msra.mxu0 %v118
  %144 = vmatpush.msra.mxu0 %v117
  %145 = vmatpush.msra.mxu0 %v116
  %146 = vmatpush.msra.mxu0 %v115
  %147 = vmatmul.f32.gmra.mxu0 %v113
  %v148 = vpop.f32.mrf.mxu0
  %v149 = vadd.f32 0.0, %v148
  %150 = vdwg.mxu0
  %v151 = vld [vmem:[%s3] sm:$0xff]
  %v152 = vld [vmem:[%s3 + $0x8] sm:$0xff]
  %v153 = vld [vmem:[%s3 + $0x10] sm:$0xff]
  %v154 = vld [vmem:[%s3 + $0x18] sm:$0xff]
  %v155 = vld [vmem:[%s3 + $0x20] sm:$0xff]
  %v156 = vld [vmem:[%s3 + $0x28] sm:$0xff]
  %v157 = vld [vmem:[%s3 + $0x30] sm:$0xff]
  %v158 = vld [vmem:[%s3 + $0x38] sm:$0xff]
  %v159 = vld [vmem:[%s3 + $0x40] sm:$0xff]
  %v160 = vld [vmem:[%s3 + $0x48] sm:$0xff]
  %v161 = vld [vmem:[%s3 + $0x50] sm:$0xff]
  %v162 = vld [vmem:[%s3 + $0x58] sm:$0xff]
  %v163 = vld [vmem:[%s3 + $0x60] sm:$0xff]
  %v164 = vld [vmem:[%s3 + $0x68] sm:$0xff]
  %v165 = vld [vmem:[%s3 + $0x70] sm:$0xff]
  %v166 = vld [vmem:[%s3 + $0x78] sm:$0xff]
  %v167 = vld [vmem:[%s3 + $0x80] sm:$0xff]
  %v168 = vld [vmem:[%s3 + $0x88] sm:$0xff]
  %v169 = vld [vmem:[%s3 + $0x90] sm:$0xff]
  %v170 = vld [vmem:[%s3 + $0x98] sm:$0xff]
  %v171 = vld [vmem:[%s3 + $0xa0] sm:$0xff]
  %v172 = vld [vmem:[%s3 + $0xa8] sm:$0xff]
  %v173 = vld [vmem:[%s3 + $0xb0] sm:$0xff]
  %v174 = vld [vmem:[%s3 + $0xb8] sm:$0xff]
  %v175 = vld [vmem:[%s3 + $0xc0] sm:$0xff]
  %v176 = vld [vmem:[%s3 + $0xc8] sm:$0xff]
  %v177 = vld [vmem:[%s3 + $0xd0] sm:$0xff]
  %v178 = vld [vmem:[%s3 + $0xd8] sm:$0xff]
  %v179 = vld [vmem:[%s3 + $0xe0] sm:$0xff]
  %v180 = vld [vmem:[%s3 + $0xe8] sm:$0xff]
  %v181 = vld [vmem:[%s3 + $0xf0] sm:$0xff]
  %v182 = vld [vmem:[%s3 + $0xf8] sm:$0xff]
  %v183 = vld [vmem:[%s4] sm:$0x3]
  %v185 = vperm.slane %v183, 0
  %v186 = vperm.slane %v183, 1
  %189 = vmatpush.msra.mxu0 %v181
  %190 = vmatpush.msra.mxu0 %v179
  %191 = vmatpush.msra.mxu0 %v177
  %192 = vmatpush.msra.mxu0 %v175
  %193 = vmatpush.msra.mxu0 %v173
  %194 = vmatpush.msra.mxu0 %v171
  %195 = vmatpush.msra.mxu0 %v169
  %196 = vmatpush.msra.mxu0 %v167
  %197 = vmatpush.msra.mxu0 %v165
  %198 = vmatpush.msra.mxu0 %v163
  %199 = vmatpush.msra.mxu0 %v161
  %200 = vmatpush.msra.mxu0 %v159
  %201 = vmatpush.msra.mxu0 %v157
  %202 = vmatpush.msra.mxu0 %v155
  %203 = vmatpush.msra.mxu0 %v153
  %204 = vmatpush.msra.mxu0 %v151
  %205 = vmatmul.f32.gmra.mxu0 %v149
  %v206 = vpop.f32.mrf.mxu0
  %v207 = vadd.f32 %v185, %v206
  %208 = vdwg.mxu0
  %209 = vmatpush.msra.mxu0 %v182
  %210 = vmatpush.msra.mxu0 %v180
  %211 = vmatpush.msra.mxu0 %v178
  %212 = vmatpush.msra.mxu0 %v176
  %213 = vmatpush.msra.mxu0 %v174
  %214 = vmatpush.msra.mxu0 %v172
  %215 = vmatpush.msra.mxu0 %v170
  %216 = vmatpush.msra.mxu0 %v168
  %217 = vmatpush.msra.mxu0 %v166
  %218 = vmatpush.msra.mxu0 %v164
  %219 = vmatpush.msra.mxu0 %v162
  %220 = vmatpush.msra.mxu0 %v160
  %221 = vmatpush.msra.mxu0 %v158
  %222 = vmatpush.msra.mxu0 %v156
  %223 = vmatpush.msra.mxu0 %v154
  %224 = vmatpush.msra.mxu0 %v152
  %225 = vmatmul.f32.gmra.mxu0 %v149
  %v226 = vpop.f32.mrf.mxu0
  %v227 = vadd.f32 %v186, %v226
  %228 = vdwg.mxu0
  %v229 = vmax.f32 %v207, 0.0
  %v230 = vmax.f32 %v227, 0.0
  %v231 = vld [vmem:[%s5] sm:$0xff]
  %v232 = vld [vmem:[%s5 + $0x8] sm:$0xff]
  %v233 = vld [vmem:[%s5 + $0x10] sm:$0xff]
  %v234 = vld [vmem:[%s5 + $0x18] sm:$0xff]
  %v235 = vld [vmem:[%s5 + $0x20] sm:$0xff]
  %v236 = vld [vmem:[%s5 + $0x28] sm:$0xff]
  %v237 = vld [vmem:[%s5 + $0x30] sm:$0xff]
  %v238 = vld [vmem:[%s5 + $0x38] sm:$0xff]
  %v239 = vld [vmem:[%s5 + $0x40] sm:$0xff]
  %v240 = vld [vmem:[%s5 + $0x48] sm:$0xff]
  %v241 = vld [vmem:[%s5 + $0x50] sm:$0xff]
  %v242 = vld [vmem:[%s5 + $0x58] sm:$0xff]
  %v243 = vld [vmem:[%s5 + $0x60] sm:$0xff]
  %v244 = vld [vmem:[%s5 + $0x68] sm:$0xff]
  %v245 = vld [vmem:[%s5 + $0x70] sm:$0xff]
  %v246 = vld [vmem:[%s5 + $0x78] sm:$0xff]
  %v247 = vld [vmem:[%s5 + $0x80] sm:$0xff]
  %v248 = vld [vmem:[%s5 + $0x88] sm:$0xff]
  %v249 = vld [vmem:[%s5 + $0x90] sm:$0xff]
  %v250 = vld [vmem:[%s5 + $0x98] sm:$0xff]
  %v251 = vld [vmem:[%s5 + $0xa0] sm:$0xff]
  %v252 = vld [vmem:[%s5 + $0xa8] sm:$0xff]
  %v253 = vld [vmem:[%s5 + $0xb0] sm:$0xff]
  %v254 = vld [vmem:[%s5 + $0xb8] sm:$0xff]
  %v255 = vld [vmem:[%s5 + $0xc0] sm:$0xff]
  %v256 = vld [vmem:[%s5 + $0xc8] sm:$0xff]
  %v257 = vld [vmem:[%s5 + $0xd0] sm:$0xff]
  %v258 = vld [vmem:[%s5 + $0xd8] sm:$0xff]
  %v259 = vld [vmem:[%s5 + $0xe0] sm:$0xff]
  %v260 = vld [vmem:[%s5 + $0xe8] sm:$0xff]
  %v261 = vld [vmem:[%s5 + $0xf0] sm:$0xff]
  %v262 = vld [vmem:[%s5 + $0xf8] sm:$0xff]
  %v263 = vld [vmem:[%s5 + $0x100] sm:$0xff]
  %v264 = vld [vmem:[%s5 + $0x108] sm:$0xff]
  %v265 = vld [vmem:[%s5 + $0x110] sm:$0xff]
  %v266 = vld [vmem:[%s5 + $0x118] sm:$0xff]
  %v267 = vld [vmem:[%s5 + $0x120] sm:$0xff]
  %v268 = vld [vmem:[%s5 + $0x128] sm:$0xff]
  %v269 = vld [vmem:[%s5 + $0x130] sm:$0xff]
  %v270 = vld [vmem:[%s5 + $0x138] sm:$0xff]
  %v271 = vld [vmem:[%s5 + $0x140] sm:$0xff]
  %v272 = vld [vmem:[%s5 + $0x148] sm:$0xff]
  %v273 = vld [vmem:[%s5 + $0x150] sm:$0xff]
  %v274 = vld [vmem:[%s5 + $0x158] sm:$0xff]
  %v275 = vld [vmem:[%s5 + $0x160] sm:$0xff]
  %v276 = vld [vmem:[%s5 + $0x168] sm:$0xff]
  %v277 = vld [vmem:[%s5 + $0x170] sm:$0xff]
  %v278 = vld [vmem:[%s5 + $0x178] sm:$0xff]
  %v279 = vld [vmem:[%s5 + $0x180] sm:$0xff]
  %v280 = vld [vmem:[%s5 + $0x188] sm:$0xff]
  %v281 = vld [vmem:[%s5 + $0x190] sm:$0xff]
  %v282 = vld [vmem:[%s5 + $0x198] sm:$0xff]
  %v283 = vld [vmem:[%s5 + $0x1a0] sm:$0xff]
  %v284 = vld [vmem:[%s5 + $0x1a8] sm:$0xff]
  %v285 = vld [vmem:[%s5 + $0x1b0] sm:$0xff]
  %v286 = vld [vmem:[%s5 + $0x1b8] sm:$0xff]
  %v287 = vld [vmem:[%s5 + $0x1c0] sm:$0xff]
  %v288 = vld [vmem:[%s5 + $0x1c8] sm:$0xff]
  %v289 = vld [vmem:[%s5 + $0x1d0] sm:$0xff]
  %v290 = vld [vmem:[%s5 + $0x1d8] sm:$0xff]
  %v291 = vld [vmem:[%s5 + $0x1e0] sm:$0xff]
  %v292 = vld [vmem:[%s5 + $0x1e8] sm:$0xff]
  %v293 = vld [vmem:[%s5 + $0x1f0] sm:$0xff]
  %v294 = vld [vmem:[%s5 + $0x1f8] sm:$0xff]
  %v295 = vld [vmem:[%s6] sm:$0x3]
  %v297 = vperm.slane %v295, 0
  %v298 = vperm.slane %v295, 1
  %301 = vmatpush.msra.mxu0 %v261
  %302 = vmatpush.msra.mxu0 %v259
  %303 = vmatpush.msra.mxu0 %v257
  %304 = vmatpush.msra.mxu0 %v255
  %305 = vmatpush.msra.mxu0 %v253
  %306 = vmatpush.msra.mxu0 %v251
  %307 = vmatpush.msra.mxu0 %v249
  %308 = vmatpush.msra.mxu0 %v247
  %309 = vmatpush.msra.mxu0 %v245
  %310 = vmatpush.msra.mxu0 %v243
  %311 = vmatpush.msra.mxu0 %v241
  %312 = vmatpush.msra.mxu0 %v239
  %313 = vmatpush.msra.mxu0 %v237
  %314 = vmatpush.msra.mxu0 %v235
  %315 = vmatpush.msra.mxu0 %v233
  %316 = vmatpush.msra.mxu0 %v231
  %317 = vmatmul.f32.gmra.mxu0 %v229
  %v318 = vpop.f32.mrf.mxu0
  %v319 = vadd.f32 %v297, %v318
  %320 = vdwg.mxu0
  %321 = vmatpush.msra.mxu0 %v293
  %322 = vmatpush.msra.mxu0 %v291
  %323 = vmatpush.msra.mxu0 %v289
  %324 = vmatpush.msra.mxu0 %v287
  %325 = vmatpush.msra.mxu0 %v285
  %326 = vmatpush.msra.mxu0 %v283
  %327 = vmatpush.msra.mxu0 %v281
  %328 = vmatpush.msra.mxu0 %v279
  %329 = vmatpush.msra.mxu0 %v277
  %330 = vmatpush.msra.mxu0 %v275
  %331 = vmatpush.msra.mxu0 %v273
  %332 = vmatpush.msra.mxu0 %v271
  %333 = vmatpush.msra.mxu0 %v269
  %334 = vmatpush.msra.mxu0 %v267
  %335 = vmatpush.msra.mxu0 %v265
  %336 = vmatpush.msra.mxu0 %v263
  %337 = vmatmul.f32.gmra.mxu0 %v230
  %v338 = vpop.f32.mrf.mxu0
  %v339 = vadd.f32 %v319, %v338
  %340 = vdwg.mxu0
  %341 = vmatpush.msra.mxu0 %v262
  %342 = vmatpush.msra.mxu0 %v260
  %343 = vmatpush.msra.mxu0 %v258
  %344 = vmatpush.msra.mxu0 %v256
  %345 = vmatpush.msra.mxu0 %v254
  %346 = vmatpush.msra.mxu0 %v252
  %347 = vmatpush.msra.mxu0 %v250
  %348 = vmatpush.msra.mxu0 %v248
  %349 = vmatpush.msra.mxu0 %v246
  %350 = vmatpush.msra.mxu0 %v244
  %351 = vmatpush.msra.mxu0 %v242
  %352 = vmatpush.msra.mxu0 %v240
  %353 = vmatpush.msra.mxu0 %v238
  %354 = vmatpush.msra.mxu0 %v236
  %355 = vmatpush.msra.mxu0 %v234
  %356 = vmatpush.msra.mxu0 %v232
  %357 = vmatmul.f32.gmra.mxu0 %v229
  %v358 = vpop.f32.mrf.mxu0
  %v359 = vadd.f32 %v298, %v358
  %360 = vdwg.mxu0
  %361 = vmatpush.msra.mxu0 %v294
  %362 = vmatpush.msra.mxu0 %v292
  %363 = vmatpush.msra.mxu0 %v290
  %364 = vmatpush.msra.mxu0 %v288
  %365 = vmatpush.msra.mxu0 %v286
  %366 = vmatpush.msra.mxu0 %v284
  %367 = vmatpush.msra.mxu0 %v282
  %368 = vmatpush.msra.mxu0 %v280
  %369 = vmatpush.msra.mxu0 %v278
  %370 = vmatpush.msra.mxu0 %v276
  %371 = vmatpush.msra.mxu0 %v274
  %372 = vmatpush.msra.mxu0 %v272
  %373 = vmatpush.msra.mxu0 %v270
  %374 = vmatpush.msra.mxu0 %v268
  %375 = vmatpush.msra.mxu0 %v266
  %376 = vmatpush.msra.mxu0 %v264
  %377 = vmatmul.f32.gmra.mxu0 %v230
  %v378 = vpop.f32.mrf.mxu0
  %v379 = vadd.f32 %v359, %v378
  %380 = vdwg.mxu0
  %v381 = vmax.f32 %v339, 0.0
  %v382 = vmax.f32 %v379, 0.0
  %v383 = vld [vmem:[%s7] sm:$0xff]
  %v384 = vld [vmem:[%s7 + $0x8] sm:$0xff]
  %v385 = vld [vmem:[%s7 + $0x10] sm:$0xff]
  %v386 = vld [vmem:[%s7 + $0x18] sm:$0xff]
  %v387 = vld [vmem:[%s7 + $0x20] sm:$0xff]
  %v388 = vld [vmem:[%s7 + $0x28] sm:$0xff]
  %v389 = vld [vmem:[%s7 + $0x30] sm:$0xff]
  %v390 = vld [vmem:[%s7 + $0x38] sm:$0xff]
  %v391 = vld [vmem:[%s7 + $0x40] sm:$0xff]
  %v392 = vld [vmem:[%s7 + $0x48] sm:$0xff]
  %v393 = vld [vmem:[%s7 + $0x50] sm:$0xff]
  %v394 = vld [vmem:[%s7 + $0x58] sm:$0xff]
  %v395 = vld [vmem:[%s7 + $0x60] sm:$0xff]
  %v396 = vld [vmem:[%s7 + $0x68] sm:$0xff]
  %v397 = vld [vmem:[%s7 + $0x70] sm:$0xff]
  %v398 = vld [vmem:[%s7 + $0x78] sm:$0xff]
  %v399 = vld [vmem:[%s7 + $0x80] sm:$0xff]
  %v400 = vld [vmem:[%s7 + $0x88] sm:$0xff]
  %v401 = vld [vmem:[%s7 + $0x90] sm:$0xff]
  %v402 = vld [vmem:[%s7 + $0x98] sm:$0xff]
  %v403 = vld [vmem:[%s7 + $0xa0] sm:$0xff]
  %v404 = vld [vmem:[%s7 + $0xa8] sm:$0xff]
  %v405 = vld [vmem:[%s7 + $0xb0] sm:$0xff]
  %v406 = vld [vmem:[%s7 + $0xb8] sm:$0xff]
  %v407 = vld [vmem:[%s7 + $0xc0] sm:$0xff]
  %v408 = vld [vmem:[%s7 + $0xc8] sm:$0xff]
  %v409 = vld [vmem:[%s7 + $0xd0] sm:$0xff]
  %v410 = vld [vmem:[%s7 + $0xd8] sm:$0xff]
  %v411 = vld [vmem:[%s7 + $0xe0] sm:$0xff]
  %v412 = vld [vmem:[%s7 + $0xe8] sm:$0xff]
  %v413 = vld [vmem:[%s7 + $0xf0] sm:$0xff]
  %v414 = vld [vmem:[%s7 + $0xf8] sm:$0xff]
  %v415 = vld [vmem:[%s7 + $0x100] sm:$0xff]
  %v416 = vld [vmem:[%s7 + $0x108] sm:$0xff]
  %v417 = vld [vmem:[%s7 + $0x110] sm:$0xff]
  %v418 = vld [vmem:[%s7 + $0x118] sm:$0xff]
  %v419 = vld [vmem:[%s7 + $0x120] sm:$0xff]
  %v420 = vld [vmem:[%s7 + $0x128] sm:$0xff]
  %v421 = vld [vmem:[%s7 + $0x130] sm:$0xff]
  %v422 = vld [vmem:[%s7 + $0x138] sm:$0xff]
  %v423 = vld [vmem:[%s7 + $0x140] sm:$0xff]
  %v424 = vld [vmem:[%s7 + $0x148] sm:$0xff]
  %v425 = vld [vmem:[%s7 + $0x150] sm:$0xff]
  %v426 = vld [vmem:[%s7 + $0x158] sm:$0xff]
  %v427 = vld [vmem:[%s7 + $0x160] sm:$0xff]
  %v428 = vld [vmem:[%s7 + $0x168] sm:$0xff]
  %v429 = vld [vmem:[%s7 + $0x170] sm:$0xff]
  %v430 = vld [vmem:[%s7 + $0x178] sm:$0xff]
  %v431 = vld [vmem:[%s7 + $0x180] sm:$0xff]
  %v432 = vld [vmem:[%s7 + $0x188] sm:$0xff]
  %v433 = vld [vmem:[%s7 + $0x190] sm:$0xff]
  %v434 = vld [vmem:[%s7 + $0x198] sm:$0xff]
  %v435 = vld [vmem:[%s7 + $0x1a0] sm:$0xff]
  %v436 = vld [vmem:[%s7 + $0x1a8] sm:$0xff]
  %v437 = vld [vmem:[%s7 + $0x1b0] sm:$0xff]
  %v438 = vld [vmem:[%s7 + $0x1b8] sm:$0xff]
  %v439 = vld [vmem:[%s7 + $0x1c0] sm:$0xff]
  %v440 = vld [vmem:[%s7 + $0x1c8] sm:$0xff]
  %v441 = vld [vmem:[%s7 + $0x1d0] sm:$0xff]
  %v442 = vld [vmem:[%s7 + $0x1d8] sm:$0xff]
  %v443 = vld [vmem:[%s7 + $0x1e0] sm:$0xff]
  %v444 = vld [vmem:[%s7 + $0x1e8] sm:$0xff]
  %v445 = vld [vmem:[%s7 + $0x1f0] sm:$0xff]
  %v446 = vld [vmem:[%s7 + $0x1f8] sm:$0xff]
  %v447 = vld [vmem:[%s8] sm:$0x3]
  %v449 = vperm.slane %v447, 0
  %v450 = vperm.slane %v447, 1
  %453 = vmatpush.msra.mxu0 %v413
  %454 = vmatpush.msra.mxu0 %v411
  %455 = vmatpush.msra.mxu0 %v409
  %456 = vmatpush.msra.mxu0 %v407
  %457 = vmatpush.msra.mxu0 %v405
  %458 = vmatpush.msra.mxu0 %v403
  %459 = vmatpush.msra.mxu0 %v401
  %460 = vmatpush.msra.mxu0 %v399
  %461 = vmatpush.msra.mxu0 %v397
  %462 = vmatpush.msra.mxu0 %v395
  %463 = vmatpush.msra.mxu0 %v393
  %464 = vmatpush.msra.mxu0 %v391
  %465 = vmatpush.msra.mxu0 %v389
  %466 = vmatpush.msra.mxu0 %v387
  %467 = vmatpush.msra.mxu0 %v385
  %468 = vmatpush.msra.mxu0 %v383
  %469 = vmatmul.f32.gmra.mxu0 %v381
  %v470 = vpop.f32.mrf.mxu0
  %v471 = vadd.f32 %v449, %v470
  %472 = vdwg.mxu0
  %473 = vmatpush.msra.mxu0 %v445
  %474 = vmatpush.msra.mxu0 %v443
  %475 = vmatpush.msra.mxu0 %v441
  %476 = vmatpush.msra.mxu0 %v439
  %477 = vmatpush.msra.mxu0 %v437
  %478 = vmatpush.msra.mxu0 %v435
  %479 = vmatpush.msra.mxu0 %v433
  %480 = vmatpush.msra.mxu0 %v431
  %481 = vmatpush.msra.mxu0 %v429
  %482 = vmatpush.msra.mxu0 %v427
  %483 = vmatpush.msra.mxu0 %v425
  %484 = vmatpush.msra.mxu0 %v423
  %485 = vmatpush.msra.mxu0 %v421
  %486 = vmatpush.msra.mxu0 %v419
  %487 = vmatpush.msra.mxu0 %v417
  %488 = vmatpush.msra.mxu0 %v415
  %489 = vmatmul.f32.gmra.mxu0 %v382
  %v490 = vpop.f32.mrf.mxu0
  %v491 = vadd.f32 %v471, %v490
  %492 = vdwg.mxu0
  %493 = vmatpush.msra.mxu0 %v414
  %494 = vmatpush.msra.mxu0 %v412
  %495 = vmatpush.msra.mxu0 %v410
  %496 = vmatpush.msra.mxu0 %v408
  %497 = vmatpush.msra.mxu0 %v406
  %498 = vmatpush.msra.mxu0 %v404
  %499 = vmatpush.msra.mxu0 %v402
  %500 = vmatpush.msra.mxu0 %v400
  %501 = vmatpush.msra.mxu0 %v398
  %502 = vmatpush.msra.mxu0 %v396
  %503 = vmatpush.msra.mxu0 %v394
  %504 = vmatpush.msra.mxu0 %v392
  %505 = vmatpush.msra.mxu0 %v390
  %506 = vmatpush.msra.mxu0 %v388
  %507 = vmatpush.msra.mxu0 %v386
  %508 = vmatpush.msra.mxu0 %v384
  %509 = vmatmul.f32.gmra.mxu0 %v381
  %v510 = vpop.f32.mrf.mxu0
  %v511 = vadd.f32 %v450, %v510
  %512 = vdwg.mxu0
  %513 = vmatpush.msra.mxu0 %v446
  %514 = vmatpush.msra.mxu0 %v444
  %515 = vmatpush.msra.mxu0 %v442
  %516 = vmatpush.msra.mxu0 %v440
  %517 = vmatpush.msra.mxu0 %v438
  %518 = vmatpush.msra.mxu0 %v436
  %519 = vmatpush.msra.mxu0 %v434
  %520 = vmatpush.msra.mxu0 %v432
  %521 = vmatpush.msra.mxu0 %v430
  %522 = vmatpush.msra.mxu0 %v428
  %523 = vmatpush.msra.mxu0 %v426
  %524 = vmatpush.msra.mxu0 %v424
  %525 = vmatpush.msra.mxu0 %v422
  %526 = vmatpush.msra.mxu0 %v420
  %527 = vmatpush.msra.mxu0 %v418
  %528 = vmatpush.msra.mxu0 %v416
  %529 = vmatmul.f32.gmra.mxu0 %v382
  %v530 = vpop.f32.mrf.mxu0
  %v531 = vadd.f32 %v511, %v530
  %532 = vdwg.mxu0
  %v533 = vmax.f32 %v491, 0.0
  %v534 = vmax.f32 %v531, 0.0
  %535 = vst [vmem:[%s9] sm:$0xff] %v533
  %536 = vst [vmem:[%s9 + $0x8] sm:$0xff] %v534
  // Predicated region
  $region38: #{mean_encoder_forward.1} parent=0 // pred_check
    _
  $region39: #{mean_encoder_forward.1} parent=0 // pred_check_branch
    %538 = sbr.rel (0) target = $region41
  $region40: #{mean_encoder_forward.1} parent=0 // pred_region
    _
  $region41: #{mean_encoder_forward.1} parent=0 // pred_fallthru
    _
  // Predicated region
  $region42: #{mean_encoder_forward.1} parent=0 // pred_check
    _
  $region43: #{mean_encoder_forward.1} parent=0 // pred_check_branch
    %540 = sbr.rel (0) target = $region45
  $region44: #{mean_encoder_forward.1} parent=0 // pred_region
    _
  $region45: #{mean_encoder_forward.1} parent=0 // pred_fallthru
    _

</llo_original>
